<compile_context>
chip_gen: v5e
topology: v5e:2x2
jax: 0.10.0
libtpu: 0.0.40
codegen_flags: <defaults>
</compile_context>

<pallas_src>
import functools

import jax
import jax.numpy as jnp
from jax.experimental import pallas as pl
from jax.experimental.pallas import tpu as pltpu

# ---------------- problem sizes (small, consistent with the module) ----------
BATCH = 2                       # batch size
CH, H, W_IMG = 4, 16, 16        # image: NCHW -> 4*16*16 = 1024 pixels per image
DESC_DIM = 128                  # SIFT descriptor dimension
N_DESC = (CH * H * W_IMG) // DESC_DIM   # 8 synthetic descriptors per image
N_CLUSTERS = 32                 # kmeans.n_clusters
NUM_CLASSES = 8                 # SVM classes

K_PAD = 128                     # pad the cluster axis to a full 128-lane vreg
C_PAD = 128                     # pad the class axis -> lane-dense output store
MAX_B_TILE = 512                # 512 imgs * 8 desc = 4096 MXU rows per grid step
MIN_SPLIT_B = 64                # below this, a single tile (overhead-dominated anyway)
VMEM_LIMIT_BYTES = 48 * 1024 * 1024   # < v7x 64 MiB physical; > v5e 16 MiB scoped default


def _round_up(x, m):
    return ((x + m - 1) // m) * m


def sift_svm_kernel(desc_ref, cent_t_ref, cnorm_ref, wt_ref, b_ref, out_ref,
                    *, n_imgs, n_desc):
    """One grid step == one batch tile of `n_imgs` images.

    desc_ref  : (n_imgs*n_desc, D)  bf16  flattened descriptors of this tile
    cent_t_ref: (D, K_PAD)          bf16  pre-transposed, padded kmeans centers
    cnorm_ref : (1, K_PAD)          f32   ||c_k||^2 (+huge for pad lanes)
    wt_ref    : (K_PAD, C_PAD)      f32   padded W^T (pad rows/cols are zero)
    b_ref     : (1, C_PAD)          f32   SVM bias (pad lanes zero)
    out_ref   : (n_imgs, C_PAD)     f32   SVM scores (lane-dense slab)
    """
    desc = desc_ref[...]                                             # (rows, D) bf16

    # KMeans.predict == argmin_k ||d - c_k||^2; ||d||^2 is constant per row,
    # so the argmin only needs ||c_k||^2 - 2 d.c_k.  bf16 inputs, f32 acc,
    # one MXU-native (rows,128)@(128,128) matmul per tile.
    dots = jnp.dot(desc, cent_t_ref[...],
                   preferred_element_type=jnp.float32)               # (rows, K_PAD)
    dist = cnorm_ref[...] - 2.0 * dots                               # (rows, K_PAD)

    # Full-lane (128-wide) argmin with lowest-index tie break (== np.argmin).
    lane = jax.lax.broadcasted_iota(jnp.int32, dist.shape, 1)        # (rows, K_PAD)
    min_d = jnp.min(dist, axis=-1, keepdims=True)                    # (rows, 1)
    idx = jnp.min(jnp.where(dist <= min_d, lane, K_PAD), axis=-1, keepdims=True)
    one_hot = (lane == idx).astype(jnp.float32)                      # (rows, K_PAD)

    # Per-image histograms: split the sublane axis (last dim stays 128, so the
    # reshape is layout-free) and do an n_desc-deep sublane reduce.  No MXU
    # pass, no O(tile^2) segment matrix.
    hist = jnp.sum(one_hot.reshape(n_imgs, n_desc, K_PAD), axis=1)   # (n_imgs, K_PAD)

    # hist / (||hist||_2 + 1e-6); approx reciprocal rides the (idle) EUP slot.
    norm = jnp.sqrt(jnp.sum(hist * hist, axis=-1, keepdims=True))    # (n_imgs, 1)
    hist = hist * pl.reciprocal(norm + 1e-6, approx=True)

    # Batched linear SVM head:  (n_imgs, K_PAD) @ (K_PAD, C_PAD) + B.
    # One MXU pass whether C is 8 or 128; the padded store is lane-dense.
    out = jnp.dot(hist, wt_ref[...], preferred_element_type=jnp.float32)
    out_ref[...] = out + b_ref[...]                                  # (n_imgs, C_PAD)


def sift_linear_svm_forward(descriptors, centroids, svm_w, svm_b):
    """descriptors: (B, M, D); centroids: (K, D); svm_w: (C, K); svm_b: (C,)."""
    b, m, d = descriptors.shape
    k = centroids.shape[0]
    c = svm_w.shape[0]
    assert d == DESC_DIM and k <= K_PAD and c <= C_PAD

    # Batch tiling: big tiles amortize per-grid-step overhead; for large
    # batches keep >= 2 tiles so v7x's two TensorCores both get work.
    if b <= MIN_SPLIT_B:
        b_tile = b
    elif b <= 2 * MAX_B_TILE:
        b_tile = min(MAX_B_TILE, _round_up(pl.cdiv(b, 2), 8))
    else:
        b_tile = MAX_B_TILE
    n_tiles = pl.cdiv(b, b_tile)
    b_pad = n_tiles * b_tile

    # Flatten the batch into one lane-aligned (B*M, D) bf16 slab so each grid
    # step runs a single MXU-shaped distance matmul instead of B tiny ones.
    desc2d = descriptors.astype(jnp.bfloat16).reshape(b * m, d)
    if b_pad != b:
        desc2d = jnp.pad(desc2d, ((0, (b_pad - b) * m), (0, 0)))

    # Pre-transpose + pad the centers to (D, K_PAD) bf16 once in XLA so the
    # in-kernel matmul contracts on the MXU-native axis (no per-step vxpose).
    # Pad centers get a huge ||c||^2 so they never win the argmin, and zero
    # rows/cols in W^T / bias so pad lanes cannot leak into the SVM scores.
    cent_t = jnp.zeros((d, K_PAD), jnp.bfloat16).at[:, :k].set(
        centroids.astype(jnp.bfloat16).T)
    cnorm = jnp.sum(centroids.astype(jnp.float32) ** 2, axis=-1)
    cnorm_pad = jnp.full((1, K_PAD), 1e30, jnp.float32).at[0, :k].set(cnorm)
    wt_pad = jnp.zeros((K_PAD, C_PAD), jnp.float32).at[:k, :c].set(
        svm_w.astype(jnp.float32).T)
    bias = jnp.zeros((1, C_PAD), jnp.float32).at[0, :c].set(
        svm_b.astype(jnp.float32))

    rows_per_tile = b_tile * m
    kernel = functools.partial(sift_svm_kernel, n_imgs=b_tile, n_desc=m)

    out = pl.pallas_call(
        kernel,
        out_shape=jax.ShapeDtypeStruct((b_pad, C_PAD), jnp.float32),
        grid_spec=pltpu.PrefetchScalarGridSpec(
            num_scalar_prefetch=0,
            grid=(n_tiles,),
            in_specs=[
                pl.BlockSpec((rows_per_tile, d), lambda i: (i, 0)),   # descriptors
                pl.BlockSpec((d, K_PAD), lambda i: (0, 0)),           # centers^T
                pl.BlockSpec((1, K_PAD), lambda i: (0, 0)),           # ||c||^2
                pl.BlockSpec((K_PAD, C_PAD), lambda i: (0, 0)),       # W^T (padded)
                pl.BlockSpec((1, C_PAD), lambda i: (0, 0)),           # bias
            ],
            out_specs=pl.BlockSpec((b_tile, C_PAD), lambda i: (i, 0)),  # lane-dense
        ),
        compiler_params=pltpu.CompilerParams(
            dimension_semantics=("parallel",),       # batch tiles shard across TCs
            vmem_limit_bytes=VMEM_LIMIT_BYTES),
    )(desc2d, cent_t, cnorm_pad, wt_pad, bias)
    return out[:b, :c]                                               # (B, C)


def images_to_descriptors(x_nchw):
    # TODO(synk): cv2 SIFT + image_preprocess have no Pallas/TPU equivalent;
    # descriptors are a deterministic reshape of the image pixels instead.
    b = x_nchw.shape[0]
    return x_nchw.reshape(b, N_DESC, DESC_DIM).astype(jnp.float32)


def reference_forward(descriptors, centroids, svm_w, svm_b):
    """Plain-JAX reference of the same math (mirrors the kernel's bf16 dots)."""
    dots = jnp.einsum("bmd,kd->bmk",
                      descriptors.astype(jnp.bfloat16),
                      centroids.astype(jnp.bfloat16),
                      preferred_element_type=jnp.float32)
    cnorm = jnp.sum(centroids.astype(jnp.float32) ** 2, axis=-1)
    d2 = cnorm[None, None, :] - 2.0 * dots
    idx = jnp.argmin(d2, axis=-1)                                     # (B, M)
    hist = jnp.sum(jax.nn.one_hot(idx, N_CLUSTERS, dtype=jnp.float32), axis=1)
    hist = hist / (jnp.linalg.norm(hist, axis=-1, keepdims=True) + 1e-6)
    return hist @ svm_w.T + svm_b[None, :]


if __name__ == "__main__":
    key = jax.random.PRNGKey(0)
    k_img, k_cent, k_w, k_b = jax.random.split(key, 4)

    # deterministic inputs / parameters
    x = jax.random.normal(k_img, (BATCH, CH, H, W_IMG), dtype=jnp.float32)
    centroids = jax.random.normal(k_cent, (N_CLUSTERS, DESC_DIM), jnp.float32)
    svm_w = jax.random.normal(k_w, (NUM_CLASSES, N_CLUSTERS), jnp.float32)
    svm_b = jax.random.normal(k_b, (NUM_CLASSES,), jnp.float32)

    desc = images_to_descriptors(x)

    out = sift_linear_svm_forward(desc, centroids, svm_w, svm_b)
    out = jax.block_until_ready(out)

    ref = reference_forward(desc, centroids, svm_w, svm_b)
    assert out.shape == (BATCH, NUM_CLASSES)
    assert jnp.allclose(out, ref, atol=2e-3, rtol=2e-3), "mismatch vs reference"

    print("KERNEL_OK")
</pallas_src>

<mosaic_0001>
module attributes {stable_mosaic.version = 11 : i64} {
  func.func @sift_svm_kernel(%arg0: i32, %arg1: memref<16x128xbf16, #tpu.memory_space<vmem>>, %arg2: memref<128x128xbf16, #tpu.memory_space<vmem>>, %arg3: memref<1x128xf32, #tpu.memory_space<vmem>>, %arg4: memref<128x128xf32, #tpu.memory_space<vmem>>, %arg5: memref<1x128xf32, #tpu.memory_space<vmem>>, %arg6: memref<2x128xf32, #tpu.memory_space<vmem>>) attributes {dimension_semantics = [#tpu.dimension_semantics<parallel>], iteration_bounds = array<i64: 1>, scalar_prefetch = 0 : i64, scratch_operands = 0 : i64, tpu.core_type = #tpu.core_type<tc>, window_params = [{transform_indices = @transform_0, window_bounds = array<i64: 16, 128>}, {pipeline_mode = #tpu.pipeline_mode<synchronous>, transform_indices = @transform_1, window_bounds = array<i64: 128, 128>}, {pipeline_mode = #tpu.pipeline_mode<synchronous>, transform_indices = @transform_2, window_bounds = array<i64: 1, 128>}, {pipeline_mode = #tpu.pipeline_mode<synchronous>, transform_indices = @transform_3, window_bounds = array<i64: 128, 128>}, {pipeline_mode = #tpu.pipeline_mode<synchronous>, transform_indices = @transform_4, window_bounds = array<i64: 1, 128>}, {transform_indices = @transform_5, window_bounds = array<i64: 2, 128>}]} {
    %c0 = arith.constant 0 : index
    %c0_0 = arith.constant 0 : index
    %0 = vector.load %arg1[%c0, %c0_0] : memref<16x128xbf16, #tpu.memory_space<vmem>>, vector<16x128xbf16>
    %c0_1 = arith.constant 0 : index
    %c0_2 = arith.constant 0 : index
    %1 = vector.load %arg2[%c0_1, %c0_2] : memref<128x128xbf16, #tpu.memory_space<vmem>>, vector<128x128xbf16>
    %cst = arith.constant dense<0.000000e+00> : vector<16x128xf32>
    %2 = tpu.matmul %0, %1, %cst {dimension_numbers = #tpu.dot_dimension_numbers<[1], [0], [0], [1], [0, 0, 1, 1], [], []>} : vector<16x128xbf16>, vector<128x128xbf16>, vector<16x128xf32> -> vector<16x128xf32>
    %c0_3 = arith.constant 0 : index
    %c0_4 = arith.constant 0 : index
    %3 = vector.load %arg3[%c0_3, %c0_4] : memref<1x128xf32, #tpu.memory_space<vmem>>, vector<1x128xf32>
    %cst_5 = arith.constant 2.000000e+00 : f32
    %4 = vector.broadcast %cst_5 : f32 to vector<16x128xf32>
    %5 = arith.mulf %4, %2 : vector<16x128xf32>
    %6 = vector.broadcast %3 : vector<1x128xf32> to vector<16x128xf32>
    %7 = arith.subf %6, %5 : vector<16x128xf32>
    %8 = tpu.iota {dimensions = array<i32: 1>} : vector<16x128xi32>
    %cst_6 = arith.constant dense<0x7F800000> : vector<16xf32>
    %9 = vector.multi_reduction <minimumf>, %7, %cst_6 [1] : vector<16x128xf32> to vector<16xf32>
    %10 = vector.shape_cast %9 : vector<16xf32> to vector<16x1xf32>
    %11 = vector.broadcast %10 : vector<16x1xf32> to vector<16x128xf32>
    %12 = arith.cmpf ole, %7, %11 : vector<16x128xf32>
    %c128_i32 = arith.constant 128 : i32
    %13 = vector.broadcast %c128_i32 : i32 to vector<16x128xi32>
    %14 = arith.select %12, %8, %13 : vector<16x128xi1>, vector<16x128xi32>
    %cst_7 = arith.constant dense<2147483647> : vector<16xi32>
    %15 = vector.multi_reduction <minsi>, %14, %cst_7 [1] : vector<16x128xi32> to vector<16xi32>
    %16 = vector.shape_cast %15 : vector<16xi32> to vector<16x1xi32>
    %17 = vector.broadcast %16 : vector<16x1xi32> to vector<16x128xi32>
    %18 = arith.cmpi eq, %8, %17 : vector<16x128xi32>
    %19 = arith.extui %18 : vector<16x128xi1> to vector<16x128xi32>
    %20 = arith.sitofp %19 : vector<16x128xi32> to vector<16x128xf32>
    %21 = vector.shape_cast %20 : vector<16x128xf32> to vector<2x8x128xf32>
    %cst_8 = arith.constant dense<0.000000e+00> : vector<2x128xf32>
    %22 = vector.multi_reduction <add>, %21, %cst_8 [1] : vector<2x8x128xf32> to vector<2x128xf32>
    %23 = arith.mulf %22, %22 : vector<2x128xf32>
    %cst_9 = arith.constant dense<0.000000e+00> : vector<2xf32>
    %24 = vector.multi_reduction <add>, %23, %cst_9 [1] : vector<2x128xf32> to vector<2xf32>
    %25 = vector.shape_cast %24 : vector<2xf32> to vector<2x1xf32>
    %26 = math.sqrt %25 : vector<2x1xf32>
    %cst_10 = arith.constant 9.99999997E-7 : f32
    %27 = vector.broadcast %cst_10 : f32 to vector<2x1xf32>
    %28 = arith.addf %26, %27 : vector<2x1xf32>
    %29 = tpu.reciprocal %28 {approx = true} : vector<2x1xf32> -> vector<2x1xf32>
    %30 = vector.broadcast %29 : vector<2x1xf32> to vector<2x128xf32>
    %31 = arith.mulf %22, %30 : vector<2x128xf32>
    %c0_11 = arith.constant 0 : index
    %c0_12 = arith.constant 0 : index
    %32 = vector.load %arg4[%c0_11, %c0_12] : memref<128x128xf32, #tpu.memory_space<vmem>>, vector<128x128xf32>
    %cst_13 = arith.constant dense<0.000000e+00> : vector<2x128xf32>
    %33 = tpu.matmul %31, %32, %cst_13 {dimension_numbers = #tpu.dot_dimension_numbers<[1], [0], [0], [1], [0, 0, 1, 1], [], []>} : vector<2x128xf32>, vector<128x128xf32>, vector<2x128xf32> -> vector<2x128xf32>
    %c0_14 = arith.constant 0 : index
    %c0_15 = arith.constant 0 : index
    %34 = vector.load %arg5[%c0_14, %c0_15] : memref<1x128xf32, #tpu.memory_space<vmem>>, vector<1x128xf32>
    %35 = vector.broadcast %34 : vector<1x128xf32> to vector<2x128xf32>
    %36 = arith.addf %33, %35 : vector<2x128xf32>
    %c0_16 = arith.constant 0 : index
    %c0_17 = arith.constant 0 : index
    %37 = vector.load %arg6[%c0_16, %c0_17] : memref<2x128xf32, #tpu.memory_space<vmem>>, vector<2x128xf32>
    tpu.vector_store %arg6[%c0_16, %c0_17], %36 {strides = array<i32>} : memref<2x128xf32, #tpu.memory_space<vmem>>, vector<2x128xf32>,
    return
  }
  func.func @transform_0(%arg0: i32) -> (i32, i32) {
    %c0_i32 = arith.constant 0 : i32
    %c0_i32_0 = arith.constant 0 : i32
    return %arg0, %c0_i32 : i32, i32
  }
  func.func @transform_1(%arg0: i32) -> (i32, i32) {
    %c0_i32 = arith.constant 0 : i32
    %c0_i32_0 = arith.constant 0 : i32
    %c0_i32_1 = arith.constant 0 : i32
    return %c0_i32, %c0_i32_0 : i32, i32
  }
  func.func @transform_2(%arg0: i32) -> (i32, i32) {
    %c0_i32 = arith.constant 0 : i32
    %c0_i32_0 = arith.constant 0 : i32
    %c0_i32_1 = arith.constant 0 : i32
    return %c0_i32, %c0_i32_0 : i32, i32
  }
  func.func @transform_3(%arg0: i32) -> (i32, i32) {
    %c0_i32 = arith.constant 0 : i32
    %c0_i32_0 = arith.constant 0 : i32
    %c0_i32_1 = arith.constant 0 : i32
    return %c0_i32, %c0_i32_0 : i32, i32
  }
  func.func @transform_4(%arg0: i32) -> (i32, i32) {
    %c0_i32 = arith.constant 0 : i32
    %c0_i32_0 = arith.constant 0 : i32
    %c0_i32_1 = arith.constant 0 : i32
    return %c0_i32, %c0_i32_0 : i32, i32
  }
  func.func @transform_5(%arg0: i32) -> (i32, i32) {
    %c0_i32 = arith.constant 0 : i32
    %c0_i32_0 = arith.constant 0 : i32
    return %arg0, %c0_i32 : i32, i32
  }
}

</mosaic_0001>

<llo_original>
// kernel: tpu_custom_call.1
$region0: #{tpu_custom_call.1}
  #allocation0 [shape = 'u32[]', space=smem, size = 0x4, offset = 0x4, fixed_abs, tag = 'smem constant byte address 0x4 - core index']
  #allocation1 [shape = 'u32[72,128]{1,0:T(1,128)}', space=vmem, size = 0x9000, scoped, tag = 'internal scratch']
  %s0 = inlined_call_operand.hbm [shape: bf16[16,128], index: 0, kind: input, shape index: {}]
  %s1 = inlined_call_operand.hbm [shape: bf16[128,128], index: 1, kind: input, shape index: {}]
  %s2 = inlined_call_operand.vmem [shape: f32[1,128], index: 2, kind: input, shape index: {}]
  %s3 = inlined_call_operand.hbm [shape: f32[128,128], index: 3, kind: input, shape index: {}]
  %s4 = inlined_call_operand.vmem [shape: f32[1,128], index: 4, kind: input, shape index: {}]
  %s5 = inlined_call_operand.hbm [shape: f32[2,128], index: 5, kind: output, shape index: {}]
  %s6 = sld [smem:[#allocation0]]
  $region42: #{tpu_custom_call.1} parent=0
    _
  %s8 = ssub.s32 1, %s6
  %s9 = scalar_select 0, %s8, %s6
  $region1: #{tpu_custom_call.1} parent=0
    #allocation2 [shape = 'u8[4096]{0}', space=vmem, size = 0x1000, scoped, tag = 'input window, operand 0, single buffered']
    #allocation3 [shape = 's32[1]{0}', space=sflag, size = 0x4, scoped, tag = 'scoped memory for tpu_custom_call.1']
    #allocation4 [shape = 's32[1]{0}', space=sflag, size = 0x4, scoped, tag = 'scoped memory for tpu_custom_call.1']
    #allocation5 [shape = 'u8[32768]{0}', space=vmem, size = 0x8000, scoped, tag = 'input window, operand 1, single buffered']
    #allocation6 [shape = 's32[1]{0}', space=sflag, size = 0x4, scoped, tag = 'scoped memory for tpu_custom_call.1']
    #allocation7 [shape = 'u8[65536]{0}', space=vmem, size = 0x10000, scoped, tag = 'input window, operand 3, single buffered']
    #allocation8 [shape = 'u8[1024]{0}', space=vmem, size = 0x400, scoped, tag = 'output window, operand 0, single buffered']
    %10 = vsyncpa [#allocation3], 0
    %11 = vsyncpa [#allocation6], 0
    %12 = vsyncpa [#allocation4], 0
    // Predicated region
    $region2: #{tpu_custom_call.1} parent=1 // pred_check
      _
    $region3: #{tpu_custom_call.1} parent=1 // pred_check_branch
      %14 = sbr.rel (0) target = $region5
    $region4: #{tpu_custom_call.1} parent=1 // pred_region
      %16 = vsyncadd [#allocation3], 0
      %s17 = sshll.u32 %s0, 4
      %s18 = int_to_ptr.hbm [resolvable:$true] %s17
      %s19 = sshll.u32 [#allocation2], 4
      %s20 = int_to_ptr.vmem [resolvable:$true] %s19
      %25 = dma.hbm_to_vmem [thread:$0]  %s18, 128, %s20, [#allocation3], 64, 64, 4
    $region5: #{tpu_custom_call.1} parent=1 // pred_fallthru
      _
    // Predicated region
    $region6: #{tpu_custom_call.1} parent=1 // pred_check
      _
    $region7: #{tpu_custom_call.1} parent=1 // pred_check_branch
      %27 = sbr.rel (0) target = $region9
    $region8: #{tpu_custom_call.1} parent=1 // pred_region
      %29 = vsyncadd [#allocation6], 0
      %s30 = sshll.u32 %s1, 4
      %s31 = int_to_ptr.hbm [resolvable:$true] %s30
      %s32 = sshll.u32 [#allocation5], 4
      %s33 = int_to_ptr.vmem [resolvable:$true] %s32
      %38 = dma.hbm_to_vmem [thread:$0]  %s31, 1024, %s33, [#allocation6], 64, 64, 4
    $region9: #{tpu_custom_call.1} parent=1 // pred_fallthru
      _
    // Predicated region
    $region10: #{tpu_custom_call.1} parent=1 // pred_check
      _
    $region11: #{tpu_custom_call.1} parent=1 // pred_check_branch
      %40 = sbr.rel (0) target = $region13
    $region12: #{tpu_custom_call.1} parent=1 // pred_region
      _
    $region13: #{tpu_custom_call.1} parent=1 // pred_fallthru
      _
    // Predicated region
    $region14: #{tpu_custom_call.1} parent=1 // pred_check
      _
    $region15: #{tpu_custom_call.1} parent=1 // pred_check_branch
      %42 = sbr.rel (0) target = $region17
    $region16: #{tpu_custom_call.1} parent=1 // pred_region
      %44 = vsyncadd [#allocation6], 0
      %s45 = sshll.u32 %s3, 4
      %s46 = int_to_ptr.hbm [resolvable:$true] %s45
      %s47 = sshll.u32 [#allocation7], 4
      %s48 = int_to_ptr.vmem [resolvable:$true] %s47
      %53 = dma.hbm_to_vmem [thread:$0]  %s46, 2048, %s48, [#allocation6], 128, 128, 8
    $region17: #{tpu_custom_call.1} parent=1 // pred_fallthru
      _
    // Predicated region
    $region18: #{tpu_custom_call.1} parent=1 // pred_check
      _
    $region19: #{tpu_custom_call.1} parent=1 // pred_check_branch
      %55 = sbr.rel (0) target = $region21
    $region20: #{tpu_custom_call.1} parent=1 // pred_region
      _
    $region21: #{tpu_custom_call.1} parent=1 // pred_fallthru
      _
    // Predicated region
    $region22: #{tpu_custom_call.1} parent=1 // pred_check
      _
    $region23: #{tpu_custom_call.1} parent=1 // pred_check_branch
      %57 = sbr.rel (0) target = $region25
    $region24: #{tpu_custom_call.1} parent=1 // pred_region
      %59 = dma.done [#allocation3], 128
    $region25: #{tpu_custom_call.1} parent=1 // pred_fallthru
      _
    // Predicated region
    $region26: #{tpu_custom_call.1} parent=1 // pred_check
      _
    $region27: #{tpu_custom_call.1} parent=1 // pred_check_branch
      %61 = sbr.rel (0) target = $region29
    $region28: #{tpu_custom_call.1} parent=1 // pred_region
      %63 = dma.done [#allocation6], 1024
    $region29: #{tpu_custom_call.1} parent=1 // pred_fallthru
      _
    // Predicated region
    $region30: #{tpu_custom_call.1} parent=1 // pred_check
      _
    $region31: #{tpu_custom_call.1} parent=1 // pred_check_branch
      %65 = sbr.rel (0) target = $region33
    $region32: #{tpu_custom_call.1} parent=1 // pred_region
      %67 = dma.done [#allocation6], 2048
    $region33: #{tpu_custom_call.1} parent=1 // pred_fallthru
      _
    %v68 = vld [vmem:[#allocation2] sm:$0xf]
    %v69 = vld [vmem:[#allocation2 + $0x4] sm:$0xf]
    %v70 = vld [vmem:[#allocation5] sm:$0xf]
    %v71 = vld [vmem:[#allocation5 + $0x4] sm:$0xf]
    %v72 = vld [vmem:[#allocation5 + $0x8] sm:$0xf]
    %v73 = vld [vmem:[#allocation5 + $0xc] sm:$0xf]
    %v74 = vld [vmem:[#allocation5 + $0x10] sm:$0xf]
    %v75 = vld [vmem:[#allocation5 + $0x14] sm:$0xf]
    %v76 = vld [vmem:[#allocation5 + $0x18] sm:$0xf]
    %v77 = vld [vmem:[#allocation5 + $0x1c] sm:$0xf]
    %v78 = vld [vmem:[#allocation5 + $0x20] sm:$0xf]
    %v79 = vld [vmem:[#allocation5 + $0x24] sm:$0xf]
    %v80 = vld [vmem:[#allocation5 + $0x28] sm:$0xf]
    %v81 = vld [vmem:[#allocation5 + $0x2c] sm:$0xf]
    %v82 = vld [vmem:[#allocation5 + $0x30] sm:$0xf]
    %v83 = vld [vmem:[#allocation5 + $0x34] sm:$0xf]
    %v84 = vld [vmem:[#allocation5 + $0x38] sm:$0xf]
    %v85 = vld [vmem:[#allocation5 + $0x3c] sm:$0xf]
    %v88 = vunpack.c.l.b16 %v68
    %v89 = vunpack.c.l.b16 %v69
    %v90 = vpack.c.b16 %v89, %v88
    %v108 = vunpack.c.l.b16 %v70
    %v109 = vunpack.c.l.b16 %v71
    %v110 = vunpack.c.l.b16 %v72
    %v111 = vunpack.c.l.b16 %v73
    %v112 = vunpack.c.l.b16 %v74
    %v113 = vunpack.c.l.b16 %v75
    %v114 = vunpack.c.l.b16 %v76
    %v115 = vunpack.c.l.b16 %v77
    %v116 = vunpack.c.l.b16 %v78
    %v117 = vunpack.c.l.b16 %v79
    %v118 = vunpack.c.l.b16 %v80
    %v119 = vunpack.c.l.b16 %v81
    %v120 = vunpack.c.l.b16 %v82
    %v121 = vunpack.c.l.b16 %v83
    %v122 = vunpack.c.l.b16 %v84
    %v123 = vunpack.c.l.b16 %v85
    %v124 = vpack.c.b16 %v109, %v108
    %v125 = vpack.c.b16 %v111, %v110
    %v126 = vpack.c.b16 %v113, %v112
    %v127 = vpack.c.b16 %v115, %v114
    %v128 = vpack.c.b16 %v117, %v116
    %v129 = vpack.c.b16 %v119, %v118
    %v130 = vpack.c.b16 %v121, %v120
    %v131 = vpack.c.b16 %v123, %v122
    %140 = vmatpush.bf16.msra.mxu0 %v131
    %141 = vmatpush.bf16.msra.mxu0 %v130
    %142 = vmatpush.bf16.msra.mxu0 %v129
    %143 = vmatpush.bf16.msra.mxu0 %v128
    %144 = vmatpush.bf16.msra.mxu0 %v127
    %145 = vmatpush.bf16.msra.mxu0 %v126
    %146 = vmatpush.bf16.msra.mxu0 %v125
    %147 = vmatpush.bf16.msra.mxu0 %v124
    %148 = vmatmul.bf16.gmra.mxu0 %v90
    %v149 = vpop.f32.mrf.mxu0
    %v150 = vadd.f32 0.0, %v149
    %v151 = vpop.f32.mrf.mxu0
    %v152 = vadd.f32 0.0, %v151
    %153 = vdwg.mxu0
    %v154 = vld [vmem:[%s2] sm:$0x1]
    %v155 = vmul.f32 %v150, 2.0
    %v156 = vmul.f32 %v152, 2.0
    %v158 = vperm.slane %v154, 0
    %v160 = vsub.f32 %v158, %v155
    %v161 = vsub.f32 %v158, %v156
    %v162 = vlaneseq
    %v163 = vand.u32 %v162, 127
    %164 = vmin.xlane.f32.xlu0 %v160
    %v165 = vpop.xlane.xlu0 %164
    %166 = vmin.xlane.f32.xlu0 %v161
    %v167 = vpop.xlane.xlu0 %166
    %vm168 = vcmp.le.f32.partialorder %v160, %v165
    %vm169 = vcmp.le.f32.partialorder %v161, %v167
    %v170 = vsel %vm168, %v163, 128
    %v171 = vsel %vm169, %v163, 128
    %v172 = vand.u32 %v170, 65535
    %v173 = vshra.s32 %v170, 16
    %v174 = vcvt.s32.f32 %v172
    %v175 = vcvt.s32.f32 %v173
    %176 = vmin.xlane.f32.xlu0 %v175
    %v177 = vpop.xlane.xlu0 %176
    %vm178 = vcmp.eq.f32.partialorder %v175, %v177
    %v179 = vsel %vm178, %v174, inf
    %180 = vmin.xlane.f32.xlu0 %v179
    %v181 = vpop.xlane.xlu0 %180
    %v182 = vcvt.f32.s32 %v181
    %v183 = vcvt.f32.s32 %v177
    %v184 = vshll.u32 %v183, 16
    %v185 = vadd.s32 %v184, %v182
    %v186 = vand.u32 %v171, 65535
    %v187 = vshra.s32 %v171, 16
    %v188 = vcvt.s32.f32 %v186
    %v189 = vcvt.s32.f32 %v187
    %190 = vmin.xlane.f32.xlu0 %v189
    %v191 = vpop.xlane.xlu0 %190
    %vm192 = vcmp.eq.f32.partialorder %v189, %v191
    %v193 = vsel %vm192, %v188, inf
    %194 = vmin.xlane.f32.xlu0 %v193
    %v195 = vpop.xlane.xlu0 %194
    %v196 = vcvt.f32.s32 %v195
    %v197 = vcvt.f32.s32 %v191
    %v198 = vshll.u32 %v197, 16
    %v199 = vadd.s32 %v198, %v196
    %vm200 = vcmp.eq.s32.totalorder %v163, %v185
    %vm201 = vcmp.eq.s32.totalorder %v163, %v199
    %v202 = vsel %vm200, 1, 0
    %v203 = vsel %vm201, 1, 0
    %v204 = vcvt.s32.f32 %v202
    %v205 = vcvt.s32.f32 %v203
    %v206 = vrot.slane %v204, 4
    %v207 = vadd.f32 %v204, %v206
    %v208 = vrot.slane %v207, 2
    %v209 = vadd.f32 %v207, %v208
    %v210 = vrot.slane %v209, 1
    %v211 = vadd.f32 %v209, %v210
    %v212 = vrot.slane %v205, 4
    %v213 = vadd.f32 %v205, %v212
    %v214 = vrot.slane %v213, 2
    %v215 = vadd.f32 %v213, %v214
    %v216 = vrot.slane %v215, 1
    %v217 = vadd.f32 %v215, %v216
    %v218 = vmul.f32 %v211, %v211
    %v219 = vmul.f32 %v217, %v217
    %vm222 = vcmask 1041409
    %v223 = vsel %vm222, %v219, %v218
    %vm225 = vcmask 1041408
    %v226 = vsel %vm225, %v223, 0.0
    %227 = vadd.xlane.f32.xlu0 %v226
    %v228 = vpop.xlane.xlu0 %227
    %v229 = vrsqrt.pop %v228
    %v230 = vmul.f32 %v229, %v228
    %v231 = vmul.f32 %v230, %v229
    %v232 = vmul.f32 0.5, %v231
    %v233 = vsub.f32 1.5, %v232
    %v234 = vmul.f32 %v229, %v233
    %v235 = vmul.f32 %v228, %v234
    %vm236 = vcmp.eq.f32.partialorder %v228, inf
    %v237 = vsel %vm236, %v228, %v235
    %vm238 = vcmp.eq.f32.partialorder %v228, 0.0
    %v239 = vand.u32 %v228, 2147483648
    %v240 = vsel %vm238, %v239, %v237
    %v241 = vadd.f32 %v240, 1e-06
    %v242 = vrcp.pop %v241
    %v244 = vrot.slane %v242, 1
    %v247 = vmul.f32 %v211, %v242
    %v248 = vmul.f32 %v217, %v244
    %v249 = vld [vmem:[#allocation7] sm:$0xff]
    %v250 = vld [vmem:[#allocation7 + $0x8] sm:$0xff]
    %v251 = vld [vmem:[#allocation7 + $0x10] sm:$0xff]
    %v252 = vld [vmem:[#allocation7 + $0x18] sm:$0xff]
    %v253 = vld [vmem:[#allocation7 + $0x20] sm:$0xff]
    %v254 = vld [vmem:[#allocation7 + $0x28] sm:$0xff]
    %v255 = vld [vmem:[#allocation7 + $0x30] sm:$0xff]
    %v256 = vld [vmem:[#allocation7 + $0x38] sm:$0xff]
    %v257 = vld [vmem:[#allocation7 + $0x40] sm:$0xff]
    %v258 = vld [vmem:[#allocation7 + $0x48] sm:$0xff]
    %v259 = vld [vmem:[#allocation7 + $0x50] sm:$0xff]
    %v260 = vld [vmem:[#allocation7 + $0x58] sm:$0xff]
    %v261 = vld [vmem:[#allocation7 + $0x60] sm:$0xff]
    %v262 = vld [vmem:[#allocation7 + $0x68] sm:$0xff]
    %v263 = vld [vmem:[#allocation7 + $0x70] sm:$0xff]
    %v264 = vld [vmem:[#allocation7 + $0x78] sm:$0xff]
    %v265 = vld [vmem:[%s4] sm:$0x1]
    %v267 = vperm.slane %v265, 0
    %v271 = vrot.slane %v248, 7
    %v272 = vsel %vm222, %v271, %v247
    %274 = vmatpush.msra.mxu0 %v264
    %275 = vmatpush.msra.mxu0 %v263
    %276 = vmatpush.msra.mxu0 %v262
    %277 = vmatpush.msra.mxu0 %v261
    %278 = vmatpush.msra.mxu0 %v260
    %279 = vmatpush.msra.mxu0 %v259
    %280 = vmatpush.msra.mxu0 %v258
    %281 = vmatpush.msra.mxu0 %v257
    %282 = vmatpush.msra.mxu0 %v256
    %283 = vmatpush.msra.mxu0 %v255
    %284 = vmatpush.msra.mxu0 %v254
    %285 = vmatpush.msra.mxu0 %v253
    %286 = vmatpush.msra.mxu0 %v252
    %287 = vmatpush.msra.mxu0 %v251
    %288 = vmatpush.msra.mxu0 %v250
    %289 = vmatpush.msra.mxu0 %v249
    %290 = vmatmul.f32.gmra.mxu0 %v272
    %v291 = vpop.f32.mrf.mxu0
    %v292 = vadd.f32 %v267, %v291
    %293 = vdwg.mxu0
    %294 = vst [vmem:[#allocation8] sm:$0x3] %v292
    // Predicated region
    $region34: #{tpu_custom_call.1} parent=1 // pred_check
      _
    $region35: #{tpu_custom_call.1} parent=1 // pred_check_branch
      %296 = sbr.rel (0) target = $region37
    $region36: #{tpu_custom_call.1} parent=1 // pred_region
      %298 = vsyncadd [#allocation4], 0
      %s300 = sshll.u32 [#allocation8], 4
      %s301 = int_to_ptr.vmem [resolvable:$true] %s300
      %s302 = sshll.u32 %s5, 4
      %s303 = int_to_ptr.hbm [resolvable:$true] %s302
      %305 = dma.vmem_to_hbm [thread:$0]  %s301, 32, %s303, [#allocation4]
    $region37: #{tpu_custom_call.1} parent=1 // pred_fallthru
      _
    // Predicated region
    $region38: #{tpu_custom_call.1} parent=1 // pred_check
      _
    $region39: #{tpu_custom_call.1} parent=1 // pred_check_branch
      %307 = sbr.rel (0) target = $region41
    $region40: #{tpu_custom_call.1} parent=1 // pred_region
      %309 = dma.done [#allocation4], 32
    $region41: #{tpu_custom_call.1} parent=1 // pred_fallthru
      _
    %310 = vsyncpa [#allocation3], 1
    %311 = vsyncpa [#allocation6], 1
    %312 = vsyncpa [#allocation4], 1

</llo_original>
